<compile_context>
chip_gen: v7x
topology: tpu7x:2x2x1
jax: 0.10.0
libtpu: 0.0.40
codegen_flags: <defaults>
</compile_context>

<pallas_src>
import functools

import jax
import jax.numpy as jnp
from jax.experimental import pallas as pl
from jax.experimental.pallas import tpu as pltpu


# ----------------------------------------------------------------------------
# Fused Pallas kernel: stacked LSTM + ReLU -> fc1 -> ReLU -> fcO -> sigmoid
# ----------------------------------------------------------------------------
def fused_net_kernel(*refs, num_layers):
  """Whole forward pass for one batch chunk.

  refs layout (all VMEM):
    refs[0]              : x         (T, BB, D)  f32, time-major batch chunk
    refs[1 + 3*l + 0]    : W_ih^T    (D_l, 4H)   bf16 (g columns pre-scaled x2)
    refs[1 + 3*l + 1]    : W_hh^T    (H, 4H)     bf16 (g columns pre-scaled x2)
    refs[1 + 3*l + 2]    : b_ih+b_hh (1, 4H)     f32  (g columns pre-scaled x2)
    refs[1 + 3*L + 0..3] : fc1_w^T (H,F) bf16, fc1_b (1,F) f32,
                           fcO_w^T (F,C) bf16, fcO_b (1,C) f32
    refs[-1]             : out       (L, BB, C)  f32
  """
  x_ref = refs[0]
  lw = refs[1:1 + 3 * num_layers]
  w1_t_ref, b1_ref, wo_t_ref, bo_ref, out_ref = refs[1 + 3 * num_layers:]

  T, BB, D = x_ref.shape
  H = lw[1].shape[0]                       # W_hh^T is (H, 4H)

  # Time-major stacked input for the hoisted projections: row = t*BB + b.
  layer_in = x_ref[...].reshape(T * BB, D)                       # f32

  hn_list = []
  for layer in range(num_layers):
    wih_t = lw[3 * layer + 0][...]                               # bf16
    whh_t = lw[3 * layer + 1][...]                               # bf16
    bias = lw[3 * layer + 2][...]                                # f32

    # ---- hoisted input projection + bias, off the recurrence chain --------
    # One well-shaped (T*BB, D_l) @ (D_l, 4H) MXU matmul per layer; the bias
    # is added once to the whole tile so it can never land on the
    # h-dependent chain.
    xp = jnp.dot(layer_in.astype(jnp.bfloat16), wih_t,
                 preferred_element_type=jnp.float32) + bias      # (T*BB, 4H)

    # ---- serial recurrence (fully unrolled; T is a small static int) ------
    h = jnp.zeros((BB, H), jnp.float32)
    c = jnp.zeros((BB, H), jnp.float32)
    hs = []
    for t in range(T):
      # Contiguous static (BB, 4H) sublane block — no strided gather.
      gates = xp[t * BB:(t + 1) * BB, :] + jnp.dot(
          h.astype(jnp.bfloat16), whh_t, preferred_element_type=jnp.float32)
      # Single EUP pass: sigmoid over the full gate tile.  The g gate is
      # recovered via tanh(z) = 2*sigmoid(2z) - 1 (its W/b columns were
      # pre-scaled by 2 at param-prep time).  PyTorch gate order: i, f, g, o.
      sg = jax.nn.sigmoid(gates)
      i_g = sg[:, 0 * H:1 * H]
      f_g = sg[:, 1 * H:2 * H]
      g_g = 2.0 * sg[:, 2 * H:3 * H] - 1.0
      o_g = sg[:, 3 * H:4 * H]
      c = f_g * c + i_g * g_g
      h = o_g * jnp.tanh(c)
      hs.append(h)

    hn_list.append(h)
    if layer + 1 < num_layers:
      # Stack the hidden sequence (time-major) as the next layer's input; it
      # stays VMEM/vreg resident and is consumed by ONE stacked matmul.
      layer_in = hs[0] if T == 1 else jnp.concatenate(hs, axis=0)  # (T*BB, H)
      # TODO(synk): nn.LSTM inter-layer dropout is training-only; identity here.

  # hn.view(-1, H): rows ordered (layer, batch), matching PyTorch.
  hn = hn_list[0] if num_layers == 1 else jnp.concatenate(hn_list, axis=0)

  # ---- fused MLP head: ReLU -> fc1 -> ReLU -> fcO -> sigmoid --------------
  z = jnp.maximum(hn, 0.0)
  z = jnp.dot(z.astype(jnp.bfloat16), w1_t_ref[...],
              preferred_element_type=jnp.float32) + b1_ref[...]
  z = jnp.maximum(z, 0.0)
  z = jnp.dot(z.astype(jnp.bfloat16), wo_t_ref[...],
              preferred_element_type=jnp.float32) + bo_ref[...]
  out = jax.nn.sigmoid(z)                                        # (L*BB, C)
  out_ref[...] = out.reshape(num_layers, BB, -1).astype(out_ref.dtype)


# ----------------------------------------------------------------------------
# pallas_call wrapper
# ----------------------------------------------------------------------------
def _round_up(n, m):
  return ((n + m - 1) // m) * m


def net_forward(params, x, *, numimgseq, imgw, imgh, num_layers,
                batch_block=None):
  """Fused forward pass.  `params` must be kernel-prepared (prepare_params).
  Returns (num_layers * batch, num_classes) matching the PyTorch module."""
  B = x.shape[0]
  T = numimgseq
  D = imgw * imgh
  C = params["fcO_w_t"].shape[1]

  # Batch chunk size: at least one full 8-sublane f32 tile, at most 128
  # (MXU M).  Pass a smaller batch_block to get >1 grid step, which shards
  # across both TensorCores on v7x (pure win there, no effect on v5e/v6e).
  if batch_block is None:
    batch_block = min(128, _round_up(B, 8))
  BB = batch_block
  B_pad = _round_up(B, BB)

  # (B, T, W, H) -> time-major (T, B_pad, D).  One tiny XLA transpose here
  # makes every per-step gate slice inside the kernel a contiguous sublane
  # block instead of T*num_layers strided gathers near the recurrence.
  x = x.reshape(B, T, D).astype(jnp.float32)
  x = jnp.transpose(x, (1, 0, 2))
  if B_pad != B:
    x = jnp.pad(x, ((0, 0), (0, B_pad - B), (0, 0)))

  weights = []
  for p in params["lstm"]:
    weights += [p["wih_t"], p["whh_t"], p["b"]]
  weights += [params["fc1_w_t"], params["fc1_b"],
              params["fcO_w_t"], params["fcO_b"]]

  kernel = functools.partial(fused_net_kernel, num_layers=num_layers)
  in_specs = [pl.BlockSpec((T, BB, D), lambda i: (0, i, 0))]
  in_specs += [pl.BlockSpec(w.shape, lambda i, nd=w.ndim: (0,) * nd)
               for w in weights]

  out = pl.pallas_call(
      kernel,
      out_shape=jax.ShapeDtypeStruct((num_layers, B_pad, C), jnp.float32),
      grid=(B_pad // BB,),
      in_specs=in_specs,
      out_specs=pl.BlockSpec((num_layers, BB, C), lambda i: (0, i, 0)),
      compiler_params=pltpu.CompilerParams(
          dimension_semantics=("parallel",)),
  )(x, *weights)

  # hn.view(-1, H) row order is (layer, batch); drop the batch padding.
  return out[:, :B, :].reshape(num_layers * B, C)


# ----------------------------------------------------------------------------
# Parameter init (faithful f32, PyTorch shapes) + kernel-side preparation
# ----------------------------------------------------------------------------
def init_params(key, num_classes, imgw, imgh, hidden_size, num_layers):
  input_size = imgw * imgh
  H = hidden_size * num_layers            # module does hidden_size *= num_layers
  fc1_out = int(H * 0.33)

  params = {"lstm": []}
  k_lstm = 1.0 / jnp.sqrt(H)
  for layer in range(num_layers):
    d_in = input_size if layer == 0 else H
    key, k1, k2, k3, k4 = jax.random.split(key, 5)
    w_ih = jax.random.uniform(k1, (4 * H, d_in), jnp.float32, -k_lstm, k_lstm)
    w_hh = jax.random.uniform(k2, (4 * H, H), jnp.float32, -k_lstm, k_lstm)
    b_ih = jax.random.uniform(k3, (4 * H,), jnp.float32, -k_lstm, k_lstm)
    b_hh = jax.random.uniform(k4, (4 * H,), jnp.float32, -k_lstm, k_lstm)
    params["lstm"].append({
        "wih_t": w_ih.T,                       # (d_in, 4H)
        "whh_t": w_hh.T,                       # (H, 4H)
        "b": (b_ih + b_hh)[None, :],           # (1, 4H)
    })

  key, k1, k2, k3, k4 = jax.random.split(key, 5)
  kf1 = 1.0 / jnp.sqrt(H)
  kfo = 1.0 / jnp.sqrt(fc1_out)
  params["fc1_w_t"] = jax.random.uniform(k1, (H, fc1_out), jnp.float32, -kf1, kf1)
  params["fc1_b"] = jax.random.uniform(k2, (1, fc1_out), jnp.float32, -kf1, kf1)
  params["fcO_w_t"] = jax.random.uniform(k3, (fc1_out, num_classes), jnp.float32, -kfo, kfo)
  params["fcO_b"] = jax.random.uniform(k4, (1, num_classes), jnp.float32, -kfo, kfo)
  return params


def _prescale_g_columns(w4h):
  """Scale the g-gate columns [2H, 3H) of a (..., 4H) tensor by 2 so the
  kernel can recover tanh via g = 2*sigmoid(2z) - 1 (one sigmoid per step)."""
  H = w4h.shape[-1] // 4
  scale = jnp.concatenate([
      jnp.ones((2 * H,), w4h.dtype),
      jnp.full((H,), 2.0, w4h.dtype),
      jnp.ones((H,), w4h.dtype)])
  return w4h * scale


def prepare_params(params):
  """Fold the 2x g-gate prescale into the LSTM weights/bias and cast MXU
  operands to bf16 (f32 accumulation in-kernel; biases stay f32)."""
  prepped = {"lstm": []}
  for p in params["lstm"]:
    prepped["lstm"].append({
        "wih_t": _prescale_g_columns(p["wih_t"]).astype(jnp.bfloat16),
        "whh_t": _prescale_g_columns(p["whh_t"]).astype(jnp.bfloat16),
        "b": _prescale_g_columns(p["b"]),
    })
  prepped["fc1_w_t"] = params["fc1_w_t"].astype(jnp.bfloat16)
  prepped["fc1_b"] = params["fc1_b"]
  prepped["fcO_w_t"] = params["fcO_w_t"].astype(jnp.bfloat16)
  prepped["fcO_b"] = params["fcO_b"]
  return prepped


# ----------------------------------------------------------------------------
# Pure-JAX f32 reference (faithful LSTM math, for correctness check)
# ----------------------------------------------------------------------------
def net_forward_ref(params, x, *, numimgseq, imgw, imgh, num_layers):
  B = x.shape[0]
  x = x.reshape(B, numimgseq, imgw * imgh).astype(jnp.float32)
  xt = jnp.transpose(x, (1, 0, 2))            # time-major (T, B, D)
  hn_list = []
  inp = xt
  for layer in range(num_layers):
    p = params["lstm"][layer]
    H = p["whh_t"].shape[0]
    h = jnp.zeros((B, H), jnp.float32)
    c = jnp.zeros((B, H), jnp.float32)
    hs = []
    for t in range(numimgseq):
      gates = inp[t] @ p["wih_t"] + h @ p["whh_t"] + p["b"]
      i_g = jax.nn.sigmoid(gates[:, :H])
      f_g = jax.nn.sigmoid(gates[:, H:2 * H])
      g_g = jnp.tanh(gates[:, 2 * H:3 * H])
      o_g = jax.nn.sigmoid(gates[:, 3 * H:])
      c = f_g * c + i_g * g_g
      h = o_g * jnp.tanh(c)
      hs.append(h)
    inp = jnp.stack(hs)
    hn_list.append(h)
  hn = jnp.concatenate(hn_list, axis=0)
  z = jnp.maximum(hn, 0.0)
  z = jnp.maximum(z @ params["fc1_w_t"] + params["fc1_b"], 0.0)
  z = z @ params["fcO_w_t"] + params["fcO_b"]
  return jax.nn.sigmoid(z)


# ----------------------------------------------------------------------------
if __name__ == "__main__":
  def run_case(num_classes, imgw, imgh, hidden_size, num_layers, numimgseq, batch):
    key = jax.random.PRNGKey(0)
    key, pkey, xkey = jax.random.split(key, 3)
    params = init_params(pkey, num_classes, imgw, imgh, hidden_size, num_layers)
    kparams = prepare_params(params)
    x = jax.random.normal(xkey, (batch, numimgseq, imgw, imgh), jnp.float32)

    fwd = functools.partial(net_forward, numimgseq=numimgseq, imgw=imgw,
                            imgh=imgh, num_layers=num_layers)
    out = jax.block_until_ready(jax.jit(fwd)(kparams, x))

    ref = net_forward_ref(params, x, numimgseq=numimgseq, imgw=imgw,
                          imgh=imgh, num_layers=num_layers)
    assert out.shape == (num_layers * batch, num_classes), out.shape
    # Tolerance covers bf16 MXU operands (elementwise math stays f32);
    # genuine bugs (gate order / layout) produce O(0.1) deviations.
    assert jnp.allclose(out, ref, rtol=1e-2, atol=1e-2), (
        float(jnp.max(jnp.abs(out - ref))))

  # Default-style config (single LSTM layer) ...
  run_case(num_classes=3, imgw=8, imgh=8, hidden_size=32, num_layers=1,
           numimgseq=8, batch=2)
  # ... and a stacked-layer config to exercise the fused multi-layer path.
  run_case(num_classes=3, imgw=8, imgh=8, hidden_size=32, num_layers=2,
           numimgseq=8, batch=2)

  print("KERNEL_OK")
</pallas_src>

<mosaic_0001>
module attributes {stable_mosaic.version = 11 : i64} {
  func.func @fused_net_kernel(%arg0: i32, %arg1: memref<8x8x64xf32, #tpu.memory_space<vmem>>, %arg2: memref<64x128xbf16, #tpu.memory_space<vmem>>, %arg3: memref<32x128xbf16, #tpu.memory_space<vmem>>, %arg4: memref<1x128xf32, #tpu.memory_space<vmem>>, %arg5: memref<32x10xbf16, #tpu.memory_space<vmem>>, %arg6: memref<1x10xf32, #tpu.memory_space<vmem>>, %arg7: memref<10x3xbf16, #tpu.memory_space<vmem>>, %arg8: memref<1x3xf32, #tpu.memory_space<vmem>>, %arg9: memref<1x8x3xf32, #tpu.memory_space<vmem>>) attributes {dimension_semantics = [#tpu.dimension_semantics<parallel>], iteration_bounds = array<i64: 1>, scalar_prefetch = 0 : i64, scratch_operands = 0 : i64, tpu.core_type = #tpu.core_type<tc>, window_params = [{transform_indices = @transform_0, window_bounds = array<i64: 8, 8, 64>}, {pipeline_mode = #tpu.pipeline_mode<synchronous>, transform_indices = @transform_1, window_bounds = array<i64: 64, 128>}, {pipeline_mode = #tpu.pipeline_mode<synchronous>, transform_indices = @transform_2, window_bounds = array<i64: 32, 128>}, {pipeline_mode = #tpu.pipeline_mode<synchronous>, transform_indices = @transform_3, window_bounds = array<i64: 1, 128>}, {pipeline_mode = #tpu.pipeline_mode<synchronous>, transform_indices = @transform_4, window_bounds = array<i64: 32, 10>}, {pipeline_mode = #tpu.pipeline_mode<synchronous>, transform_indices = @transform_5, window_bounds = array<i64: 1, 10>}, {pipeline_mode = #tpu.pipeline_mode<synchronous>, transform_indices = @transform_6, window_bounds = array<i64: 10, 3>}, {pipeline_mode = #tpu.pipeline_mode<synchronous>, transform_indices = @transform_7, window_bounds = array<i64: 1, 3>}, {transform_indices = @transform_8, window_bounds = array<i64: 1, 8, 3>}]} {
    %c0 = arith.constant 0 : index
    %c0_0 = arith.constant 0 : index
    %c0_1 = arith.constant 0 : index
    %0 = vector.load %arg1[%c0, %c0_0, %c0_1] : memref<8x8x64xf32, #tpu.memory_space<vmem>>, vector<8x8x64xf32>
    %1 = vector.shape_cast %0 : vector<8x8x64xf32> to vector<64x64xf32>
    %c0_2 = arith.constant 0 : index
    %c0_3 = arith.constant 0 : index
    %2 = vector.load %arg2[%c0_2, %c0_3] : memref<64x128xbf16, #tpu.memory_space<vmem>>, vector<64x128xbf16>
    %c0_4 = arith.constant 0 : index
    %c0_5 = arith.constant 0 : index
    %3 = vector.load %arg3[%c0_4, %c0_5] : memref<32x128xbf16, #tpu.memory_space<vmem>>, vector<32x128xbf16>
    %c0_6 = arith.constant 0 : index
    %c0_7 = arith.constant 0 : index
    %4 = vector.load %arg4[%c0_6, %c0_7] : memref<1x128xf32, #tpu.memory_space<vmem>>, vector<1x128xf32>
    %5 = arith.truncf %1 : vector<64x64xf32> to vector<64x64xbf16>
    %cst = arith.constant dense<0.000000e+00> : vector<64x128xf32>
    %6 = tpu.matmul %5, %2, %cst {dimension_numbers = #tpu.dot_dimension_numbers<[1], [0], [0], [1], [0, 0, 1, 1], [], []>} : vector<64x64xbf16>, vector<64x128xbf16>, vector<64x128xf32> -> vector<64x128xf32>
    %7 = vector.broadcast %4 : vector<1x128xf32> to vector<64x128xf32>
    %8 = arith.addf %6, %7 : vector<64x128xf32>
    %cst_8 = arith.constant 0.000000e+00 : f32
    %9 = vector.broadcast %cst_8 : f32 to vector<8x32xf32>
    %cst_9 = arith.constant 0.000000e+00 : f32
    %10 = vector.broadcast %cst_9 : f32 to vector<8x32xf32>
    %11 = vector.extract_strided_slice %8 {offsets = [0, 0], sizes = [8, 128], strides = [1, 1]} : vector<64x128xf32> to vector<8x128xf32>
    %12 = arith.truncf %9 : vector<8x32xf32> to vector<8x32xbf16>
    %cst_10 = arith.constant dense<0.000000e+00> : vector<8x128xf32>
    %13 = tpu.matmul %12, %3, %cst_10 {dimension_numbers = #tpu.dot_dimension_numbers<[1], [0], [0], [1], [0, 0, 1, 1], [], []>} : vector<8x32xbf16>, vector<32x128xbf16>, vector<8x128xf32> -> vector<8x128xf32>
    %14 = arith.addf %11, %13 : vector<8x128xf32>
    %15 = arith.negf %14 : vector<8x128xf32>
    %16 = math.exp %15 : vector<8x128xf32>
    %cst_11 = arith.constant 1.000000e+00 : f32
    %17 = vector.broadcast %cst_11 : f32 to vector<8x128xf32>
    %18 = arith.addf %17, %16 : vector<8x128xf32>
    %19 = arith.divf %17, %18 : vector<8x128xf32>
    %20 = vector.extract_strided_slice %19 {offsets = [0, 0], sizes = [8, 32], strides = [1, 1]} : vector<8x128xf32> to vector<8x32xf32>
    %21 = vector.extract_strided_slice %19 {offsets = [0, 32], sizes = [8, 32], strides = [1, 1]} : vector<8x128xf32> to vector<8x32xf32>
    %22 = vector.extract_strided_slice %19 {offsets = [0, 64], sizes = [8, 32], strides = [1, 1]} : vector<8x128xf32> to vector<8x32xf32>
    %cst_12 = arith.constant 2.000000e+00 : f32
    %23 = vector.broadcast %cst_12 : f32 to vector<8x32xf32>
    %24 = arith.mulf %23, %22 : vector<8x32xf32>
    %cst_13 = arith.constant 1.000000e+00 : f32
    %25 = vector.broadcast %cst_13 : f32 to vector<8x32xf32>
    %26 = arith.subf %24, %25 : vector<8x32xf32>
    %27 = vector.extract_strided_slice %19 {offsets = [0, 96], sizes = [8, 32], strides = [1, 1]} : vector<8x128xf32> to vector<8x32xf32>
    %28 = arith.mulf %21, %10 : vector<8x32xf32>
    %29 = arith.mulf %20, %26 : vector<8x32xf32>
    %30 = arith.addf %28, %29 : vector<8x32xf32>
    %31 = math.tanh %30 : vector<8x32xf32>
    %32 = arith.mulf %27, %31 : vector<8x32xf32>
    %33 = vector.extract_strided_slice %8 {offsets = [8, 0], sizes = [8, 128], strides = [1, 1]} : vector<64x128xf32> to vector<8x128xf32>
    %34 = arith.truncf %32 : vector<8x32xf32> to vector<8x32xbf16>
    %cst_14 = arith.constant dense<0.000000e+00> : vector<8x128xf32>
    %35 = tpu.matmul %34, %3, %cst_14 {dimension_numbers = #tpu.dot_dimension_numbers<[1], [0], [0], [1], [0, 0, 1, 1], [], []>} : vector<8x32xbf16>, vector<32x128xbf16>, vector<8x128xf32> -> vector<8x128xf32>
    %36 = arith.addf %33, %35 : vector<8x128xf32>
    %37 = arith.negf %36 : vector<8x128xf32>
    %38 = math.exp %37 : vector<8x128xf32>
    %cst_15 = arith.constant 1.000000e+00 : f32
    %39 = vector.broadcast %cst_15 : f32 to vector<8x128xf32>
    %40 = arith.addf %39, %38 : vector<8x128xf32>
    %41 = arith.divf %39, %40 : vector<8x128xf32>
    %42 = vector.extract_strided_slice %41 {offsets = [0, 0], sizes = [8, 32], strides = [1, 1]} : vector<8x128xf32> to vector<8x32xf32>
    %43 = vector.extract_strided_slice %41 {offsets = [0, 32], sizes = [8, 32], strides = [1, 1]} : vector<8x128xf32> to vector<8x32xf32>
    %44 = vector.extract_strided_slice %41 {offsets = [0, 64], sizes = [8, 32], strides = [1, 1]} : vector<8x128xf32> to vector<8x32xf32>
    %cst_16 = arith.constant 2.000000e+00 : f32
    %45 = vector.broadcast %cst_16 : f32 to vector<8x32xf32>
    %46 = arith.mulf %45, %44 : vector<8x32xf32>
    %cst_17 = arith.constant 1.000000e+00 : f32
    %47 = vector.broadcast %cst_17 : f32 to vector<8x32xf32>
    %48 = arith.subf %46, %47 : vector<8x32xf32>
    %49 = vector.extract_strided_slice %41 {offsets = [0, 96], sizes = [8, 32], strides = [1, 1]} : vector<8x128xf32> to vector<8x32xf32>
    %50 = arith.mulf %43, %30 : vector<8x32xf32>
    %51 = arith.mulf %42, %48 : vector<8x32xf32>
    %52 = arith.addf %50, %51 : vector<8x32xf32>
    %53 = math.tanh %52 : vector<8x32xf32>
    %54 = arith.mulf %49, %53 : vector<8x32xf32>
    %55 = vector.extract_strided_slice %8 {offsets = [16, 0], sizes = [8, 128], strides = [1, 1]} : vector<64x128xf32> to vector<8x128xf32>
    %56 = arith.truncf %54 : vector<8x32xf32> to vector<8x32xbf16>
    %cst_18 = arith.constant dense<0.000000e+00> : vector<8x128xf32>
    %57 = tpu.matmul %56, %3, %cst_18 {dimension_numbers = #tpu.dot_dimension_numbers<[1], [0], [0], [1], [0, 0, 1, 1], [], []>} : vector<8x32xbf16>, vector<32x128xbf16>, vector<8x128xf32> -> vector<8x128xf32>
    %58 = arith.addf %55, %57 : vector<8x128xf32>
    %59 = arith.negf %58 : vector<8x128xf32>
    %60 = math.exp %59 : vector<8x128xf32>
    %cst_19 = arith.constant 1.000000e+00 : f32
    %61 = vector.broadcast %cst_19 : f32 to vector<8x128xf32>
    %62 = arith.addf %61, %60 : vector<8x128xf32>
    %63 = arith.divf %61, %62 : vector<8x128xf32>
    %64 = vector.extract_strided_slice %63 {offsets = [0, 0], sizes = [8, 32], strides = [1, 1]} : vector<8x128xf32> to vector<8x32xf32>
    %65 = vector.extract_strided_slice %63 {offsets = [0, 32], sizes = [8, 32], strides = [1, 1]} : vector<8x128xf32> to vector<8x32xf32>
    %66 = vector.extract_strided_slice %63 {offsets = [0, 64], sizes = [8, 32], strides = [1, 1]} : vector<8x128xf32> to vector<8x32xf32>
    %cst_20 = arith.constant 2.000000e+00 : f32
    %67 = vector.broadcast %cst_20 : f32 to vector<8x32xf32>
    %68 = arith.mulf %67, %66 : vector<8x32xf32>
    %cst_21 = arith.constant 1.000000e+00 : f32
    %69 = vector.broadcast %cst_21 : f32 to vector<8x32xf32>
    %70 = arith.subf %68, %69 : vector<8x32xf32>
    %71 = vector.extract_strided_slice %63 {offsets = [0, 96], sizes = [8, 32], strides = [1, 1]} : vector<8x128xf32> to vector<8x32xf32>
    %72 = arith.mulf %65, %52 : vector<8x32xf32>
    %73 = arith.mulf %64, %70 : vector<8x32xf32>
    %74 = arith.addf %72, %73 : vector<8x32xf32>
    %75 = math.tanh %74 : vector<8x32xf32>
    %76 = arith.mulf %71, %75 : vector<8x32xf32>
    %77 = vector.extract_strided_slice %8 {offsets = [24, 0], sizes = [8, 128], strides = [1, 1]} : vector<64x128xf32> to vector<8x128xf32>
    %78 = arith.truncf %76 : vector<8x32xf32> to vector<8x32xbf16>
    %cst_22 = arith.constant dense<0.000000e+00> : vector<8x128xf32>
    %79 = tpu.matmul %78, %3, %cst_22 {dimension_numbers = #tpu.dot_dimension_numbers<[1], [0], [0], [1], [0, 0, 1, 1], [], []>} : vector<8x32xbf16>, vector<32x128xbf16>, vector<8x128xf32> -> vector<8x128xf32>
    %80 = arith.addf %77, %79 : vector<8x128xf32>
    %81 = arith.negf %80 : vector<8x128xf32>
    %82 = math.exp %81 : vector<8x128xf32>
    %cst_23 = arith.constant 1.000000e+00 : f32
    %83 = vector.broadcast %cst_23 : f32 to vector<8x128xf32>
    %84 = arith.addf %83, %82 : vector<8x128xf32>
    %85 = arith.divf %83, %84 : vector<8x128xf32>
    %86 = vector.extract_strided_slice %85 {offsets = [0, 0], sizes = [8, 32], strides = [1, 1]} : vector<8x128xf32> to vector<8x32xf32>
    %87 = vector.extract_strided_slice %85 {offsets = [0, 32], sizes = [8, 32], strides = [1, 1]} : vector<8x128xf32> to vector<8x32xf32>
    %88 = vector.extract_strided_slice %85 {offsets = [0, 64], sizes = [8, 32], strides = [1, 1]} : vector<8x128xf32> to vector<8x32xf32>
    %cst_24 = arith.constant 2.000000e+00 : f32
    %89 = vector.broadcast %cst_24 : f32 to vector<8x32xf32>
    %90 = arith.mulf %89, %88 : vector<8x32xf32>
    %cst_25 = arith.constant 1.000000e+00 : f32
    %91 = vector.broadcast %cst_25 : f32 to vector<8x32xf32>
    %92 = arith.subf %90, %91 : vector<8x32xf32>
    %93 = vector.extract_strided_slice %85 {offsets = [0, 96], sizes = [8, 32], strides = [1, 1]} : vector<8x128xf32> to vector<8x32xf32>
    %94 = arith.mulf %87, %74 : vector<8x32xf32>
    %95 = arith.mulf %86, %92 : vector<8x32xf32>
    %96 = arith.addf %94, %95 : vector<8x32xf32>
    %97 = math.tanh %96 : vector<8x32xf32>
    %98 = arith.mulf %93, %97 : vector<8x32xf32>
    %99 = vector.extract_strided_slice %8 {offsets = [32, 0], sizes = [8, 128], strides = [1, 1]} : vector<64x128xf32> to vector<8x128xf32>
    %100 = arith.truncf %98 : vector<8x32xf32> to vector<8x32xbf16>
    %cst_26 = arith.constant dense<0.000000e+00> : vector<8x128xf32>
    %101 = tpu.matmul %100, %3, %cst_26 {dimension_numbers = #tpu.dot_dimension_numbers<[1], [0], [0], [1], [0, 0, 1, 1], [], []>} : vector<8x32xbf16>, vector<32x128xbf16>, vector<8x128xf32> -> vector<8x128xf32>
    %102 = arith.addf %99, %101 : vector<8x128xf32>
    %103 = arith.negf %102 : vector<8x128xf32>
    %104 = math.exp %103 : vector<8x128xf32>
    %cst_27 = arith.constant 1.000000e+00 : f32
    %105 = vector.broadcast %cst_27 : f32 to vector<8x128xf32>
    %106 = arith.addf %105, %104 : vector<8x128xf32>
    %107 = arith.divf %105, %106 : vector<8x128xf32>
    %108 = vector.extract_strided_slice %107 {offsets = [0, 0], sizes = [8, 32], strides = [1, 1]} : vector<8x128xf32> to vector<8x32xf32>
    %109 = vector.extract_strided_slice %107 {offsets = [0, 32], sizes = [8, 32], strides = [1, 1]} : vector<8x128xf32> to vector<8x32xf32>
    %110 = vector.extract_strided_slice %107 {offsets = [0, 64], sizes = [8, 32], strides = [1, 1]} : vector<8x128xf32> to vector<8x32xf32>
    %cst_28 = arith.constant 2.000000e+00 : f32
    %111 = vector.broadcast %cst_28 : f32 to vector<8x32xf32>
    %112 = arith.mulf %111, %110 : vector<8x32xf32>
    %cst_29 = arith.constant 1.000000e+00 : f32
    %113 = vector.broadcast %cst_29 : f32 to vector<8x32xf32>
    %114 = arith.subf %112, %113 : vector<8x32xf32>
    %115 = vector.extract_strided_slice %107 {offsets = [0, 96], sizes = [8, 32], strides = [1, 1]} : vector<8x128xf32> to vector<8x32xf32>
    %116 = arith.mulf %109, %96 : vector<8x32xf32>
    %117 = arith.mulf %108, %114 : vector<8x32xf32>
    %118 = arith.addf %116, %117 : vector<8x32xf32>
    %119 = math.tanh %118 : vector<8x32xf32>
    %120 = arith.mulf %115, %119 : vector<8x32xf32>
    %121 = vector.extract_strided_slice %8 {offsets = [40, 0], sizes = [8, 128], strides = [1, 1]} : vector<64x128xf32> to vector<8x128xf32>
    %122 = arith.truncf %120 : vector<8x32xf32> to vector<8x32xbf16>
    %cst_30 = arith.constant dense<0.000000e+00> : vector<8x128xf32>
    %123 = tpu.matmul %122, %3, %cst_30 {dimension_numbers = #tpu.dot_dimension_numbers<[1], [0], [0], [1], [0, 0, 1, 1], [], []>} : vector<8x32xbf16>, vector<32x128xbf16>, vector<8x128xf32> -> vector<8x128xf32>
    %124 = arith.addf %121, %123 : vector<8x128xf32>
    %125 = arith.negf %124 : vector<8x128xf32>
    %126 = math.exp %125 : vector<8x128xf32>
    %cst_31 = arith.constant 1.000000e+00 : f32
    %127 = vector.broadcast %cst_31 : f32 to vector<8x128xf32>
    %128 = arith.addf %127, %126 : vector<8x128xf32>
    %129 = arith.divf %127, %128 : vector<8x128xf32>
    %130 = vector.extract_strided_slice %129 {offsets = [0, 0], sizes = [8, 32], strides = [1, 1]} : vector<8x128xf32> to vector<8x32xf32>
    %131 = vector.extract_strided_slice %129 {offsets = [0, 32], sizes = [8, 32], strides = [1, 1]} : vector<8x128xf32> to vector<8x32xf32>
    %132 = vector.extract_strided_slice %129 {offsets = [0, 64], sizes = [8, 32], strides = [1, 1]} : vector<8x128xf32> to vector<8x32xf32>
    %cst_32 = arith.constant 2.000000e+00 : f32
    %133 = vector.broadcast %cst_32 : f32 to vector<8x32xf32>
    %134 = arith.mulf %133, %132 : vector<8x32xf32>
    %cst_33 = arith.constant 1.000000e+00 : f32
    %135 = vector.broadcast %cst_33 : f32 to vector<8x32xf32>
    %136 = arith.subf %134, %135 : vector<8x32xf32>
    %137 = vector.extract_strided_slice %129 {offsets = [0, 96], sizes = [8, 32], strides = [1, 1]} : vector<8x128xf32> to vector<8x32xf32>
    %138 = arith.mulf %131, %118 : vector<8x32xf32>
    %139 = arith.mulf %130, %136 : vector<8x32xf32>
    %140 = arith.addf %138, %139 : vector<8x32xf32>
    %141 = math.tanh %140 : vector<8x32xf32>
    %142 = arith.mulf %137, %141 : vector<8x32xf32>
    %143 = vector.extract_strided_slice %8 {offsets = [48, 0], sizes = [8, 128], strides = [1, 1]} : vector<64x128xf32> to vector<8x128xf32>
    %144 = arith.truncf %142 : vector<8x32xf32> to vector<8x32xbf16>
    %cst_34 = arith.constant dense<0.000000e+00> : vector<8x128xf32>
    %145 = tpu.matmul %144, %3, %cst_34 {dimension_numbers = #tpu.dot_dimension_numbers<[1], [0], [0], [1], [0, 0, 1, 1], [], []>} : vector<8x32xbf16>, vector<32x128xbf16>, vector<8x128xf32> -> vector<8x128xf32>
    %146 = arith.addf %143, %145 : vector<8x128xf32>
    %147 = arith.negf %146 : vector<8x128xf32>
    %148 = math.exp %147 : vector<8x128xf32>
    %cst_35 = arith.constant 1.000000e+00 : f32
    %149 = vector.broadcast %cst_35 : f32 to vector<8x128xf32>
    %150 = arith.addf %149, %148 : vector<8x128xf32>
    %151 = arith.divf %149, %150 : vector<8x128xf32>
    %152 = vector.extract_strided_slice %151 {offsets = [0, 0], sizes = [8, 32], strides = [1, 1]} : vector<8x128xf32> to vector<8x32xf32>
    %153 = vector.extract_strided_slice %151 {offsets = [0, 32], sizes = [8, 32], strides = [1, 1]} : vector<8x128xf32> to vector<8x32xf32>
    %154 = vector.extract_strided_slice %151 {offsets = [0, 64], sizes = [8, 32], strides = [1, 1]} : vector<8x128xf32> to vector<8x32xf32>
    %cst_36 = arith.constant 2.000000e+00 : f32
    %155 = vector.broadcast %cst_36 : f32 to vector<8x32xf32>
    %156 = arith.mulf %155, %154 : vector<8x32xf32>
    %cst_37 = arith.constant 1.000000e+00 : f32
    %157 = vector.broadcast %cst_37 : f32 to vector<8x32xf32>
    %158 = arith.subf %156, %157 : vector<8x32xf32>
    %159 = vector.extract_strided_slice %151 {offsets = [0, 96], sizes = [8, 32], strides = [1, 1]} : vector<8x128xf32> to vector<8x32xf32>
    %160 = arith.mulf %153, %140 : vector<8x32xf32>
    %161 = arith.mulf %152, %158 : vector<8x32xf32>
    %162 = arith.addf %160, %161 : vector<8x32xf32>
    %163 = math.tanh %162 : vector<8x32xf32>
    %164 = arith.mulf %159, %163 : vector<8x32xf32>
    %165 = vector.extract_strided_slice %8 {offsets = [56, 0], sizes = [8, 128], strides = [1, 1]} : vector<64x128xf32> to vector<8x128xf32>
    %166 = arith.truncf %164 : vector<8x32xf32> to vector<8x32xbf16>
    %cst_38 = arith.constant dense<0.000000e+00> : vector<8x128xf32>
    %167 = tpu.matmul %166, %3, %cst_38 {dimension_numbers = #tpu.dot_dimension_numbers<[1], [0], [0], [1], [0, 0, 1, 1], [], []>} : vector<8x32xbf16>, vector<32x128xbf16>, vector<8x128xf32> -> vector<8x128xf32>
    %168 = arith.addf %165, %167 : vector<8x128xf32>
    %169 = arith.negf %168 : vector<8x128xf32>
    %170 = math.exp %169 : vector<8x128xf32>
    %cst_39 = arith.constant 1.000000e+00 : f32
    %171 = vector.broadcast %cst_39 : f32 to vector<8x128xf32>
    %172 = arith.addf %171, %170 : vector<8x128xf32>
    %173 = arith.divf %171, %172 : vector<8x128xf32>
    %174 = vector.extract_strided_slice %173 {offsets = [0, 0], sizes = [8, 32], strides = [1, 1]} : vector<8x128xf32> to vector<8x32xf32>
    %175 = vector.extract_strided_slice %173 {offsets = [0, 32], sizes = [8, 32], strides = [1, 1]} : vector<8x128xf32> to vector<8x32xf32>
    %176 = vector.extract_strided_slice %173 {offsets = [0, 64], sizes = [8, 32], strides = [1, 1]} : vector<8x128xf32> to vector<8x32xf32>
    %cst_40 = arith.constant 2.000000e+00 : f32
    %177 = vector.broadcast %cst_40 : f32 to vector<8x32xf32>
    %178 = arith.mulf %177, %176 : vector<8x32xf32>
    %cst_41 = arith.constant 1.000000e+00 : f32
    %179 = vector.broadcast %cst_41 : f32 to vector<8x32xf32>
    %180 = arith.subf %178, %179 : vector<8x32xf32>
    %181 = vector.extract_strided_slice %173 {offsets = [0, 96], sizes = [8, 32], strides = [1, 1]} : vector<8x128xf32> to vector<8x32xf32>
    %182 = arith.mulf %175, %162 : vector<8x32xf32>
    %183 = arith.mulf %174, %180 : vector<8x32xf32>
    %184 = arith.addf %182, %183 : vector<8x32xf32>
    %185 = math.tanh %184 : vector<8x32xf32>
    %186 = arith.mulf %181, %185 : vector<8x32xf32>
    %cst_42 = arith.constant 0.000000e+00 : f32
    %187 = vector.broadcast %cst_42 : f32 to vector<8x32xf32>
    %188 = arith.maximumf %186, %187 : vector<8x32xf32>
    %189 = arith.truncf %188 : vector<8x32xf32> to vector<8x32xbf16>
    %c0_43 = arith.constant 0 : index
    %c0_44 = arith.constant 0 : index
    %190 = vector.load %arg5[%c0_43, %c0_44] : memref<32x10xbf16, #tpu.memory_space<vmem>>, vector<32x10xbf16>
    %cst_45 = arith.constant dense<0.000000e+00> : vector<8x10xf32>
    %191 = tpu.matmul %189, %190, %cst_45 {dimension_numbers = #tpu.dot_dimension_numbers<[1], [0], [0], [1], [0, 0, 1, 1], [], []>} : vector<8x32xbf16>, vector<32x10xbf16>, vector<8x10xf32> -> vector<8x10xf32>
    %c0_46 = arith.constant 0 : index
    %c0_47 = arith.constant 0 : index
    %192 = vector.load %arg6[%c0_46, %c0_47] : memref<1x10xf32, #tpu.memory_space<vmem>>, vector<1x10xf32>
    %193 = vector.broadcast %192 : vector<1x10xf32> to vector<8x10xf32>
    %194 = arith.addf %191, %193 : vector<8x10xf32>
    %cst_48 = arith.constant 0.000000e+00 : f32
    %195 = vector.broadcast %cst_48 : f32 to vector<8x10xf32>
    %196 = arith.maximumf %194, %195 : vector<8x10xf32>
    %197 = arith.truncf %196 : vector<8x10xf32> to vector<8x10xbf16>
    %c0_49 = arith.constant 0 : index
    %c0_50 = arith.constant 0 : index
    %198 = vector.load %arg7[%c0_49, %c0_50] : memref<10x3xbf16, #tpu.memory_space<vmem>>, vector<10x3xbf16>
    %cst_51 = arith.constant dense<0.000000e+00> : vector<8x3xf32>
    %199 = tpu.matmul %197, %198, %cst_51 {dimension_numbers = #tpu.dot_dimension_numbers<[1], [0], [0], [1], [0, 0, 1, 1], [], []>} : vector<8x10xbf16>, vector<10x3xbf16>, vector<8x3xf32> -> vector<8x3xf32>
    %c0_52 = arith.constant 0 : index
    %c0_53 = arith.constant 0 : index
    %200 = vector.load %arg8[%c0_52, %c0_53] : memref<1x3xf32, #tpu.memory_space<vmem>>, vector<1x3xf32>
    %201 = vector.broadcast %200 : vector<1x3xf32> to vector<8x3xf32>
    %202 = arith.addf %199, %201 : vector<8x3xf32>
    %203 = arith.negf %202 : vector<8x3xf32>
    %204 = math.exp %203 : vector<8x3xf32>
    %cst_54 = arith.constant 1.000000e+00 : f32
    %205 = vector.broadcast %cst_54 : f32 to vector<8x3xf32>
    %206 = arith.addf %205, %204 : vector<8x3xf32>
    %207 = arith.divf %205, %206 : vector<8x3xf32>
    %208 = vector.shape_cast %207 : vector<8x3xf32> to vector<1x8x3xf32>
    %c0_55 = arith.constant 0 : index
    %c0_56 = arith.constant 0 : index
    %c0_57 = arith.constant 0 : index
    %209 = vector.load %arg9[%c0_55, %c0_56, %c0_57] : memref<1x8x3xf32, #tpu.memory_space<vmem>>, vector<1x8x3xf32>
    tpu.vector_store %arg9[%c0_55, %c0_56, %c0_57], %208 {strides = array<i32>} : memref<1x8x3xf32, #tpu.memory_space<vmem>>, vector<1x8x3xf32>,
    return
  }
  func.func @transform_0(%arg0: i32) -> (i32, i32, i32) {
    %c0_i32 = arith.constant 0 : i32
    %c0_i32_0 = arith.constant 0 : i32
    %c0_i32_1 = arith.constant 0 : i32
    return %c0_i32, %arg0, %c0_i32_0 : i32, i32, i32
  }
  func.func @transform_1(%arg0: i32) -> (i32, i32) {
    %c0_i32 = arith.constant 0 : i32
    %c0_i32_0 = arith.constant 0 : i32
    %c0_i32_1 = arith.constant 0 : i32
    return %c0_i32, %c0_i32_0 : i32, i32
  }
  func.func @transform_2(%arg0: i32) -> (i32, i32) {
    %c0_i32 = arith.constant 0 : i32
    %c0_i32_0 = arith.constant 0 : i32
    %c0_i32_1 = arith.constant 0 : i32
    return %c0_i32, %c0_i32_0 : i32, i32
  }
  func.func @transform_3(%arg0: i32) -> (i32, i32) {
    %c0_i32 = arith.constant 0 : i32
    %c0_i32_0 = arith.constant 0 : i32
    %c0_i32_1 = arith.constant 0 : i32
    return %c0_i32, %c0_i32_0 : i32, i32
  }
  func.func @transform_4(%arg0: i32) -> (i32, i32) {
    %c0_i32 = arith.constant 0 : i32
    %c0_i32_0 = arith.constant 0 : i32
    %c0_i32_1 = arith.constant 0 : i32
    return %c0_i32, %c0_i32_0 : i32, i32
  }
  func.func @transform_5(%arg0: i32) -> (i32, i32) {
    %c0_i32 = arith.constant 0 : i32
    %c0_i32_0 = arith.constant 0 : i32
    %c0_i32_1 = arith.constant 0 : i32
    return %c0_i32, %c0_i32_0 : i32, i32
  }
  func.func @transform_6(%arg0: i32) -> (i32, i32) {
    %c0_i32 = arith.constant 0 : i32
    %c0_i32_0 = arith.constant 0 : i32
    %c0_i32_1 = arith.constant 0 : i32
    return %c0_i32, %c0_i32_0 : i32, i32
  }
  func.func @transform_7(%arg0: i32) -> (i32, i32) {
    %c0_i32 = arith.constant 0 : i32
    %c0_i32_0 = arith.constant 0 : i32
    %c0_i32_1 = arith.constant 0 : i32
    return %c0_i32, %c0_i32_0 : i32, i32
  }
  func.func @transform_8(%arg0: i32) -> (i32, i32, i32) {
    %c0_i32 = arith.constant 0 : i32
    %c0_i32_0 = arith.constant 0 : i32
    %c0_i32_1 = arith.constant 0 : i32
    return %c0_i32, %arg0, %c0_i32_0 : i32, i32, i32
  }
}

</mosaic_0001>

<llo_original>
// kernel: net_forward.1
$region0: #{net_forward.1}
  #allocation0 [shape = 'u32[]', space=smem, size = 0x4, offset = 0x4, fixed_abs, tag = 'smem constant byte address 0x4 - core index']
  #allocation1 [shape = 'u32[144,128]{1,0:T(1,128)}', space=vmem, size = 0x12000, scoped, tag = 'internal scratch']
  %s0 = inlined_call_operand.vmem [shape: f32[8,8,64], index: 0, kind: input, shape index: {}]
  %s1 = inlined_call_operand.vmem [shape: bf16[64,128], index: 1, kind: input, shape index: {}]
  %s2 = inlined_call_operand.vmem [shape: bf16[32,128], index: 2, kind: input, shape index: {}]
  %s3 = inlined_call_operand.vmem [shape: f32[1,128], index: 3, kind: input, shape index: {}]
  %s4 = inlined_call_operand.vmem [shape: bf16[32,10], index: 4, kind: input, shape index: {}]
  %s5 = inlined_call_operand.vmem [shape: f32[1,10], index: 5, kind: input, shape index: {}]
  %s6 = inlined_call_operand.vmem [shape: bf16[10,3], index: 6, kind: input, shape index: {}]
  %s7 = inlined_call_operand.vmem [shape: f32[1,3], index: 7, kind: input, shape index: {}]
  %s8 = inlined_call_operand.vmem [shape: f32[1,8,3], index: 8, kind: output, shape index: {}]
  %s9 = sld [smem:[#allocation0]]
  $region42: #{net_forward.1} parent=0
    _
  %s11 = ssub.s32 1, %s9
  %s12 = scalar_select 0, %s11, %s9
  // Predicated region
  $region2: #{net_forward.1} parent=0 // pred_check
    _
  $region3: #{net_forward.1} parent=0 // pred_check_branch
    %14 = sbr.rel (0) target = $region5
  $region4: #{net_forward.1} parent=0 // pred_region
    _
  $region5: #{net_forward.1} parent=0 // pred_fallthru
    _
  // Predicated region
  $region6: #{net_forward.1} parent=0 // pred_check
    _
  $region7: #{net_forward.1} parent=0 // pred_check_branch
    %16 = sbr.rel (0) target = $region9
  $region8: #{net_forward.1} parent=0 // pred_region
    _
  $region9: #{net_forward.1} parent=0 // pred_fallthru
    _
  // Predicated region
  $region10: #{net_forward.1} parent=0 // pred_check
    _
  $region11: #{net_forward.1} parent=0 // pred_check_branch
    %18 = sbr.rel (0) target = $region13
  $region12: #{net_forward.1} parent=0 // pred_region
    _
  $region13: #{net_forward.1} parent=0 // pred_fallthru
    _
  // Predicated region
  $region14: #{net_forward.1} parent=0 // pred_check
    _
  $region15: #{net_forward.1} parent=0 // pred_check_branch
    %20 = sbr.rel (0) target = $region17
  $region16: #{net_forward.1} parent=0 // pred_region
    _
  $region17: #{net_forward.1} parent=0 // pred_fallthru
    _
  // Predicated region
  $region18: #{net_forward.1} parent=0 // pred_check
    _
  $region19: #{net_forward.1} parent=0 // pred_check_branch
    %22 = sbr.rel (0) target = $region21
  $region20: #{net_forward.1} parent=0 // pred_region
    _
  $region21: #{net_forward.1} parent=0 // pred_fallthru
    _
  // Predicated region
  $region22: #{net_forward.1} parent=0 // pred_check
    _
  $region23: #{net_forward.1} parent=0 // pred_check_branch
    %24 = sbr.rel (0) target = $region25
  $region24: #{net_forward.1} parent=0 // pred_region
    _
  $region25: #{net_forward.1} parent=0 // pred_fallthru
    _
  // Predicated region
  $region26: #{net_forward.1} parent=0 // pred_check
    _
  $region27: #{net_forward.1} parent=0 // pred_check_branch
    %26 = sbr.rel (0) target = $region29
  $region28: #{net_forward.1} parent=0 // pred_region
    _
  $region29: #{net_forward.1} parent=0 // pred_fallthru
    _
  // Predicated region
  $region30: #{net_forward.1} parent=0 // pred_check
    _
  $region31: #{net_forward.1} parent=0 // pred_check_branch
    %28 = sbr.rel (0) target = $region33
  $region32: #{net_forward.1} parent=0 // pred_region
    _
  $region33: #{net_forward.1} parent=0 // pred_fallthru
    _
  %v30 = vld [vmem:[%s0] sm:$0xff]
  %v31 = vld [vmem:[%s0 + $0x8] sm:$0xff]
  %v32 = vld [vmem:[%s0 + $0x10] sm:$0xff]
  %v33 = vld [vmem:[%s0 + $0x18] sm:$0xff]
  %v34 = vld [vmem:[%s0 + $0x20] sm:$0xff]
  %v35 = vld [vmem:[%s0 + $0x28] sm:$0xff]
  %v36 = vld [vmem:[%s0 + $0x30] sm:$0xff]
  %v37 = vld [vmem:[%s0 + $0x38] sm:$0xff]
  %v38 = vld [vmem:[%s1] sm:$0xf]
  %v39 = vld [vmem:[%s1 + $0x4] sm:$0xf]
  %v40 = vld [vmem:[%s1 + $0x8] sm:$0xf]
  %v41 = vld [vmem:[%s1 + $0xc] sm:$0xf]
  %v42 = vld [vmem:[%s1 + $0x10] sm:$0xf]
  %v43 = vld [vmem:[%s1 + $0x14] sm:$0xf]
  %v44 = vld [vmem:[%s1 + $0x18] sm:$0xf]
  %v45 = vld [vmem:[%s1 + $0x1c] sm:$0xf]
  %v46 = vld [vmem:[%s2] sm:$0xf]
  %v47 = vld [vmem:[%s2 + $0x4] sm:$0xf]
  %v48 = vld [vmem:[%s2 + $0x8] sm:$0xf]
  %v49 = vld [vmem:[%s2 + $0xc] sm:$0xf]
  %v50 = vld [vmem:[%s3] sm:$0x1]
  %v51 = vpack.c.bf16 %v31, %v30
  %v52 = vpack.c.bf16 %v33, %v32
  %v53 = vpack.c.bf16 %v35, %v34
  %v54 = vpack.c.bf16 %v37, %v36
  %v56 = vlaneseq
  %v57 = vshrl.u32 %v56, 7
  %v58 = vsub.s32 0, %v57
  %v59 = vrot.slane %v50, %v58
  %v69 = vunpack.c.l.b16 %v38
  %v70 = vunpack.c.l.b16 %v39
  %v71 = vunpack.c.l.b16 %v40
  %v72 = vunpack.c.l.b16 %v41
  %v73 = vunpack.c.l.b16 %v42
  %v74 = vunpack.c.l.b16 %v43
  %v75 = vunpack.c.l.b16 %v44
  %v76 = vunpack.c.l.b16 %v45
  %v77 = vpack.c.b16 %v70, %v69
  %v78 = vpack.c.b16 %v72, %v71
  %v79 = vpack.c.b16 %v74, %v73
  %v80 = vpack.c.b16 %v76, %v75
  %vm85 = vcmask 523264
  %v87 = vsel %vm85, %v51, 0
  %v90 = vsel %vm85, %v52, 0
  %v93 = vsel %vm85, %v53, 0
  %v96 = vsel %vm85, %v54, 0
  %98 = vmatprep.subr.bf16.mxu0 0
  %99 = vmatpush1.bf16.msra.mxu0 %v77
  %100 = vmatprep.subr.bf16.mxu0 0
  %101 = vmatpush1.bf16.msra.mxu0 %v78
  %102 = vmatprep.subr.bf16.mxu0 0
  %103 = vmatpush1.bf16.msra.mxu0 %v79
  %104 = vmatprep.subr.bf16.mxu0 0
  %105 = vmatpush1.bf16.msra.mxu0 %v80
  %106 = vmatprep.subr.bf16.mxu0 0
  %107 = vmatpush1.bf16.msra.mxu0 0
  %108 = vmatprep.subr.bf16.mxu0 0
  %109 = vmatpush1.bf16.msra.mxu0 0
  %110 = vmatprep.subr.bf16.mxu0 0
  %111 = vmatpush1.bf16.msra.mxu0 0
  %112 = vmatprep.subr.bf16.mxu0 0
  %113 = vmatpush1.bf16.msra.mxu0 0
  %114 = vmatprep.subr.bf16.mxu0 0
  %115 = vmatpush1.bf16.msra.mxu0 0
  %116 = vmatprep.subr.bf16.mxu0 0
  %117 = vmatpush1.bf16.msra.mxu0 0
  %118 = vmatprep.subr.bf16.mxu0 0
  %119 = vmatpush1.bf16.msra.mxu0 0
  %120 = vmatprep.subr.bf16.mxu0 0
  %121 = vmatpush1.bf16.msra.mxu0 0
  %122 = vmatprep.subr.bf16.mxu0 0
  %123 = vmatpush1.bf16.msra.mxu0 0
  %124 = vmatprep.subr.bf16.mxu0 0
  %125 = vmatpush1.bf16.msra.mxu0 0
  %126 = vmatprep.subr.bf16.mxu0 0
  %127 = vmatpush1.bf16.msra.mxu0 0
  %128 = vmatprep.subr.bf16.mxu0 0
  %129 = vmatpush1.bf16.msra.mxu0 0
  %130 = vmatprep.mubr.bf16.mxu0 0
  %131 = vmatmul.mubr.bf16.gmra.mrb[0].mxu0 %v87
  %v132 = vpop.f32.mrb[0].mxu0
  %v133 = vadd.f32 %v59, %v132
  %v134 = vpop.f32.mrb[0].mxu0
  %v135 = vpop.f32.mrb[0].mxu0
  %v136 = vadd.f32 %v59, %v135
  %v137 = vpop.f32.mrb[0].mxu0
  %138 = vmatprep.mubr.bf16.mxu0 0
  %139 = vmatmul.mubr.bf16.gmra.mrb[0].mxu0 %v90
  %v140 = vpop.f32.mrb[0].mxu0
  %v141 = vadd.f32 %v59, %v140
  %v142 = vpop.f32.mrb[0].mxu0
  %v143 = vpop.f32.mrb[0].mxu0
  %v144 = vadd.f32 %v59, %v143
  %v145 = vpop.f32.mrb[0].mxu0
  %146 = vmatprep.mubr.bf16.mxu0 0
  %147 = vmatmul.mubr.bf16.gmra.mrb[0].mxu0 %v93
  %v148 = vpop.f32.mrb[0].mxu0
  %v149 = vadd.f32 %v59, %v148
  %v150 = vpop.f32.mrb[0].mxu0
  %v151 = vpop.f32.mrb[0].mxu0
  %v152 = vadd.f32 %v59, %v151
  %v153 = vpop.f32.mrb[0].mxu0
  %154 = vmatprep.mubr.bf16.mxu0 0
  %155 = vmatmul.mubr.bf16.gmra.mrb[0].mxu0 %v96
  %v156 = vpop.f32.mrb[0].mxu0
  %v157 = vadd.f32 %v59, %v156
  %v158 = vpop.f32.mrb[0].mxu0
  %v159 = vpop.f32.mrb[0].mxu0
  %v160 = vadd.f32 %v59, %v159
  %v161 = vpop.f32.mrb[0].mxu0
  %162 = vdwg.mxu0
  %v167 = vunpack.c.l.b16 %v46
  %v168 = vunpack.c.l.b16 %v47
  %v169 = vunpack.c.l.b16 %v48
  %v170 = vunpack.c.l.b16 %v49
  %v171 = vpack.c.b16 %v168, %v167
  %v172 = vpack.c.b16 %v170, %v169
  %vm175 = vcmask 261120
  %v177 = vsel %vm175, 0, 0
  %179 = vmatprep.subr.bf16.mxu0 0
  %180 = vmatpush1.bf16.msra.mxu0 %v171
  %181 = vmatprep.subr.bf16.mxu0 0
  %182 = vmatpush1.bf16.msra.mxu0 %v172
  %183 = vmatprep.subr.bf16.mxu0 0
  %184 = vmatpush1.bf16.msra.mxu0 0
  %185 = vmatprep.subr.bf16.mxu0 0
  %186 = vmatpush1.bf16.msra.mxu0 0
  %187 = vmatprep.subr.bf16.mxu0 0
  %188 = vmatpush1.bf16.msra.mxu0 0
  %189 = vmatprep.subr.bf16.mxu0 0
  %190 = vmatpush1.bf16.msra.mxu0 0
  %191 = vmatprep.subr.bf16.mxu0 0
  %192 = vmatpush1.bf16.msra.mxu0 0
  %193 = vmatprep.subr.bf16.mxu0 0
  %194 = vmatpush1.bf16.msra.mxu0 0
  %195 = vmatprep.subr.bf16.mxu0 0
  %196 = vmatpush1.bf16.msra.mxu0 0
  %197 = vmatprep.subr.bf16.mxu0 0
  %198 = vmatpush1.bf16.msra.mxu0 0
  %199 = vmatprep.subr.bf16.mxu0 0
  %200 = vmatpush1.bf16.msra.mxu0 0
  %201 = vmatprep.subr.bf16.mxu0 0
  %202 = vmatpush1.bf16.msra.mxu0 0
  %203 = vmatprep.subr.bf16.mxu0 0
  %204 = vmatpush1.bf16.msra.mxu0 0
  %205 = vmatprep.subr.bf16.mxu0 0
  %206 = vmatpush1.bf16.msra.mxu0 0
  %207 = vmatprep.subr.bf16.mxu0 0
  %208 = vmatpush1.bf16.msra.mxu0 0
  %209 = vmatprep.subr.bf16.mxu0 0
  %210 = vmatpush1.bf16.msra.mxu0 0
  %211 = vmatprep.mubr.bf16.mxu0 0
  %212 = vmatmul.mubr.bf16.gmra.mrb[0].mxu0 %v177
  %v213 = vpop.f32.mrb[0].mxu0
  %v214 = vadd.f32 0.0, %v213
  %v215 = vpop.f32.mrb[0].mxu0
  %v216 = vpop.f32.mrb[0].mxu0
  %v217 = vpop.f32.mrb[0].mxu0
  %218 = vdwg.mxu0
  %v219 = vadd.f32 %v133, %v214
  %v220 = vxor.u32 %v219, 2147483648
  %v221 = vmul.f32 %v220, 1.442695
  %v222 = vpow.pop %v221
  %v223 = vadd.f32 %v222, 1.0
  %v224 = vrcp.pop %v223
  %v225 = vmul.f32 1.0, %v224
  %v226 = vmul.f32 %v225, 2.0
  %v227 = vsub.f32 %v226, 1.0
  %v228 = vmul.f32 %v225, 0.0
  %230 = vrot.lane.b32.xlu0 %v227, 64
  %v231 = vpop.permute.xlu0 %230
  %v233 = vmul.f32 %v225, %v231
  %235 = vrot.lane.b32.xlu0 %v233, 32
  %v236 = vpop.permute.xlu0 %235
  %v238 = vadd.f32 %v228, %v236
  %v239 = vtanh.pop %v238
  %241 = vrot.lane.b32.xlu0 %v239, 64
  %v242 = vpop.permute.xlu0 %241
  %v244 = vmul.f32 %v225, %v242
  %v245 = vpack.c.bf16 %v244, %v244
  %247 = vrot.lane.b32.xlu0 %v245, 32
  %v248 = vpop.permute.xlu0 %247
  %v250 = vsel %vm175, %v248, 0
  %252 = vmatprep.subr.bf16.mxu0 0
  %253 = vmatpush1.bf16.msra.mxu0 %v171
  %254 = vmatprep.subr.bf16.mxu0 0
  %255 = vmatpush1.bf16.msra.mxu0 %v172
  %256 = vmatprep.subr.bf16.mxu0 0
  %257 = vmatpush1.bf16.msra.mxu0 0
  %258 = vmatprep.subr.bf16.mxu0 0
  %259 = vmatpush1.bf16.msra.mxu0 0
  %260 = vmatprep.subr.bf16.mxu0 0
  %261 = vmatpush1.bf16.msra.mxu0 0
  %262 = vmatprep.subr.bf16.mxu0 0
  %263 = vmatpush1.bf16.msra.mxu0 0
  %264 = vmatprep.subr.bf16.mxu0 0
  %265 = vmatpush1.bf16.msra.mxu0 0
  %266 = vmatprep.subr.bf16.mxu0 0
  %267 = vmatpush1.bf16.msra.mxu0 0
  %268 = vmatprep.subr.bf16.mxu0 0
  %269 = vmatpush1.bf16.msra.mxu0 0
  %270 = vmatprep.subr.bf16.mxu0 0
  %271 = vmatpush1.bf16.msra.mxu0 0
  %272 = vmatprep.subr.bf16.mxu0 0
  %273 = vmatpush1.bf16.msra.mxu0 0
  %274 = vmatprep.subr.bf16.mxu0 0
  %275 = vmatpush1.bf16.msra.mxu0 0
  %276 = vmatprep.subr.bf16.mxu0 0
  %277 = vmatpush1.bf16.msra.mxu0 0
  %278 = vmatprep.subr.bf16.mxu0 0
  %279 = vmatpush1.bf16.msra.mxu0 0
  %280 = vmatprep.subr.bf16.mxu0 0
  %281 = vmatpush1.bf16.msra.mxu0 0
  %282 = vmatprep.subr.bf16.mxu0 0
  %283 = vmatpush1.bf16.msra.mxu0 0
  %284 = vmatprep.mubr.bf16.mxu0 0
  %285 = vmatmul.mubr.bf16.gmra.mrb[0].mxu0 %v250
  %v286 = vpop.f32.mrb[0].mxu0
  %v287 = vadd.f32 0.0, %v286
  %v288 = vpop.f32.mrb[0].mxu0
  %v289 = vpop.f32.mrb[0].mxu0
  %v290 = vpop.f32.mrb[0].mxu0
  %291 = vdwg.mxu0
  %v292 = vadd.f32 %v136, %v287
  %v293 = vxor.u32 %v292, 2147483648
  %v294 = vmul.f32 %v293, 1.442695
  %v295 = vpow.pop %v294
  %v296 = vadd.f32 %v295, 1.0
  %v297 = vrcp.pop %v296
  %v298 = vmul.f32 1.0, %v297
  %v299 = vmul.f32 %v298, 2.0
  %v300 = vsub.f32 %v299, 1.0
  %v301 = vmul.f32 %v298, %v238
  %303 = vrot.lane.b32.xlu0 %v300, 64
  %v304 = vpop.permute.xlu0 %303
  %v306 = vmul.f32 %v298, %v304
  %308 = vrot.lane.b32.xlu0 %v306, 32
  %v309 = vpop.permute.xlu0 %308
  %v311 = vadd.f32 %v301, %v309
  %v312 = vtanh.pop %v311
  %314 = vrot.lane.b32.xlu0 %v312, 64
  %v315 = vpop.permute.xlu0 %314
  %v317 = vmul.f32 %v298, %v315
  %v318 = vpack.c.bf16 %v317, %v317
  %320 = vrot.lane.b32.xlu0 %v318, 32
  %v321 = vpop.permute.xlu0 %320
  %v323 = vsel %vm175, %v321, 0
  %325 = vmatprep.subr.bf16.mxu0 0
  %326 = vmatpush1.bf16.msra.mxu0 %v171
  %327 = vmatprep.subr.bf16.mxu0 0
  %328 = vmatpush1.bf16.msra.mxu0 %v172
  %329 = vmatprep.subr.bf16.mxu0 0
  %330 = vmatpush1.bf16.msra.mxu0 0
  %331 = vmatprep.subr.bf16.mxu0 0
  %332 = vmatpush1.bf16.msra.mxu0 0
  %333 = vmatprep.subr.bf16.mxu0 0
  %334 = vmatpush1.bf16.msra.mxu0 0
  %335 = vmatprep.subr.bf16.mxu0 0
  %336 = vmatpush1.bf16.msra.mxu0 0
  %337 = vmatprep.subr.bf16.mxu0 0
  %338 = vmatpush1.bf16.msra.mxu0 0
  %339 = vmatprep.subr.bf16.mxu0 0
  %340 = vmatpush1.bf16.msra.mxu0 0
  %341 = vmatprep.subr.bf16.mxu0 0
  %342 = vmatpush1.bf16.msra.mxu0 0
  %343 = vmatprep.subr.bf16.mxu0 0
  %344 = vmatpush1.bf16.msra.mxu0 0
  %345 = vmatprep.subr.bf16.mxu0 0
  %346 = vmatpush1.bf16.msra.mxu0 0
  %347 = vmatprep.subr.bf16.mxu0 0
  %348 = vmatpush1.bf16.msra.mxu0 0
  %349 = vmatprep.subr.bf16.mxu0 0
  %350 = vmatpush1.bf16.msra.mxu0 0
  %351 = vmatprep.subr.bf16.mxu0 0
  %352 = vmatpush1.bf16.msra.mxu0 0
  %353 = vmatprep.subr.bf16.mxu0 0
  %354 = vmatpush1.bf16.msra.mxu0 0
  %355 = vmatprep.subr.bf16.mxu0 0
  %356 = vmatpush1.bf16.msra.mxu0 0
  %357 = vmatprep.mubr.bf16.mxu0 0
  %358 = vmatmul.mubr.bf16.gmra.mrb[0].mxu0 %v323
  %v359 = vpop.f32.mrb[0].mxu0
  %v360 = vadd.f32 0.0, %v359
  %v361 = vpop.f32.mrb[0].mxu0
  %v362 = vpop.f32.mrb[0].mxu0
  %v363 = vpop.f32.mrb[0].mxu0
  %364 = vdwg.mxu0
  %v365 = vadd.f32 %v141, %v360
  %v366 = vxor.u32 %v365, 2147483648
  %v367 = vmul.f32 %v366, 1.442695
  %v368 = vpow.pop %v367
  %v369 = vadd.f32 %v368, 1.0
  %v370 = vrcp.pop %v369
  %v371 = vmul.f32 1.0, %v370
  %v372 = vmul.f32 %v371, 2.0
  %v373 = vsub.f32 %v372, 1.0
  %v374 = vmul.f32 %v371, %v311
  %376 = vrot.lane.b32.xlu0 %v373, 64
  %v377 = vpop.permute.xlu0 %376
  %v379 = vmul.f32 %v371, %v377
  %381 = vrot.lane.b32.xlu0 %v379, 32
  %v382 = vpop.permute.xlu0 %381
  %v384 = vadd.f32 %v374, %v382
  %v385 = vtanh.pop %v384
  %387 = vrot.lane.b32.xlu0 %v385, 64
  %v388 = vpop.permute.xlu0 %387
  %v390 = vmul.f32 %v371, %v388
  %v391 = vpack.c.bf16 %v390, %v390
  %393 = vrot.lane.b32.xlu0 %v391, 32
  %v394 = vpop.permute.xlu0 %393
  %v396 = vsel %vm175, %v394, 0
  %398 = vmatprep.subr.bf16.mxu0 0
  %399 = vmatpush1.bf16.msra.mxu0 %v171
  %400 = vmatprep.subr.bf16.mxu0 0
  %401 = vmatpush1.bf16.msra.mxu0 %v172
  %402 = vmatprep.subr.bf16.mxu0 0
  %403 = vmatpush1.bf16.msra.mxu0 0
  %404 = vmatprep.subr.bf16.mxu0 0
  %405 = vmatpush1.bf16.msra.mxu0 0
  %406 = vmatprep.subr.bf16.mxu0 0
  %407 = vmatpush1.bf16.msra.mxu0 0
  %408 = vmatprep.subr.bf16.mxu0 0
  %409 = vmatpush1.bf16.msra.mxu0 0
  %410 = vmatprep.subr.bf16.mxu0 0
  %411 = vmatpush1.bf16.msra.mxu0 0
  %412 = vmatprep.subr.bf16.mxu0 0
  %413 = vmatpush1.bf16.msra.mxu0 0
  %414 = vmatprep.subr.bf16.mxu0 0
  %415 = vmatpush1.bf16.msra.mxu0 0
  %416 = vmatprep.subr.bf16.mxu0 0
  %417 = vmatpush1.bf16.msra.mxu0 0
  %418 = vmatprep.subr.bf16.mxu0 0
  %419 = vmatpush1.bf16.msra.mxu0 0
  %420 = vmatprep.subr.bf16.mxu0 0
  %421 = vmatpush1.bf16.msra.mxu0 0
  %422 = vmatprep.subr.bf16.mxu0 0
  %423 = vmatpush1.bf16.msra.mxu0 0
  %424 = vmatprep.subr.bf16.mxu0 0
  %425 = vmatpush1.bf16.msra.mxu0 0
  %426 = vmatprep.subr.bf16.mxu0 0
  %427 = vmatpush1.bf16.msra.mxu0 0
  %428 = vmatprep.subr.bf16.mxu0 0
  %429 = vmatpush1.bf16.msra.mxu0 0
  %430 = vmatprep.mubr.bf16.mxu0 0
  %431 = vmatmul.mubr.bf16.gmra.mrb[0].mxu0 %v396
  %v432 = vpop.f32.mrb[0].mxu0
  %v433 = vadd.f32 0.0, %v432
  %v434 = vpop.f32.mrb[0].mxu0
  %v435 = vpop.f32.mrb[0].mxu0
  %v436 = vpop.f32.mrb[0].mxu0
  %437 = vdwg.mxu0
  %v438 = vadd.f32 %v144, %v433
  %v439 = vxor.u32 %v438, 2147483648
  %v440 = vmul.f32 %v439, 1.442695
  %v441 = vpow.pop %v440
  %v442 = vadd.f32 %v441, 1.0
  %v443 = vrcp.pop %v442
  %v444 = vmul.f32 1.0, %v443
  %v445 = vmul.f32 %v444, 2.0
  %v446 = vsub.f32 %v445, 1.0
  %v447 = vmul.f32 %v444, %v384
  %449 = vrot.lane.b32.xlu0 %v446, 64
  %v450 = vpop.permute.xlu0 %449
  %v452 = vmul.f32 %v444, %v450
  %454 = vrot.lane.b32.xlu0 %v452, 32
  %v455 = vpop.permute.xlu0 %454
  %v457 = vadd.f32 %v447, %v455
  %v458 = vtanh.pop %v457
  %460 = vrot.lane.b32.xlu0 %v458, 64
  %v461 = vpop.permute.xlu0 %460
  %v463 = vmul.f32 %v444, %v461
  %v464 = vpack.c.bf16 %v463, %v463
  %466 = vrot.lane.b32.xlu0 %v464, 32
  %v467 = vpop.permute.xlu0 %466
  %v469 = vsel %vm175, %v467, 0
  %471 = vmatprep.subr.bf16.mxu0 0
  %472 = vmatpush1.bf16.msra.mxu0 %v171
  %473 = vmatprep.subr.bf16.mxu0 0
  %474 = vmatpush1.bf16.msra.mxu0 %v172
  %475 = vmatprep.subr.bf16.mxu0 0
  %476 = vmatpush1.bf16.msra.mxu0 0
  %477 = vmatprep.subr.bf16.mxu0 0
  %478 = vmatpush1.bf16.msra.mxu0 0
  %479 = vmatprep.subr.bf16.mxu0 0
  %480 = vmatpush1.bf16.msra.mxu0 0
  %481 = vmatprep.subr.bf16.mxu0 0
  %482 = vmatpush1.bf16.msra.mxu0 0
  %483 = vmatprep.subr.bf16.mxu0 0
  %484 = vmatpush1.bf16.msra.mxu0 0
  %485 = vmatprep.subr.bf16.mxu0 0
  %486 = vmatpush1.bf16.msra.mxu0 0
  %487 = vmatprep.subr.bf16.mxu0 0
  %488 = vmatpush1.bf16.msra.mxu0 0
  %489 = vmatprep.subr.bf16.mxu0 0
  %490 = vmatpush1.bf16.msra.mxu0 0
  %491 = vmatprep.subr.bf16.mxu0 0
  %492 = vmatpush1.bf16.msra.mxu0 0
  %493 = vmatprep.subr.bf16.mxu0 0
  %494 = vmatpush1.bf16.msra.mxu0 0
  %495 = vmatprep.subr.bf16.mxu0 0
  %496 = vmatpush1.bf16.msra.mxu0 0
  %497 = vmatprep.subr.bf16.mxu0 0
  %498 = vmatpush1.bf16.msra.mxu0 0
  %499 = vmatprep.subr.bf16.mxu0 0
  %500 = vmatpush1.bf16.msra.mxu0 0
  %501 = vmatprep.subr.bf16.mxu0 0
  %502 = vmatpush1.bf16.msra.mxu0 0
  %503 = vmatprep.mubr.bf16.mxu0 0
  %504 = vmatmul.mubr.bf16.gmra.mrb[0].mxu0 %v469
  %v505 = vpop.f32.mrb[0].mxu0
  %v506 = vadd.f32 0.0, %v505
  %v507 = vpop.f32.mrb[0].mxu0
  %v508 = vpop.f32.mrb[0].mxu0
  %v509 = vpop.f32.mrb[0].mxu0
  %510 = vdwg.mxu0
  %v511 = vadd.f32 %v149, %v506
  %v512 = vxor.u32 %v511, 2147483648
  %v513 = vmul.f32 %v512, 1.442695
  %v514 = vpow.pop %v513
  %v515 = vadd.f32 %v514, 1.0
  %v516 = vrcp.pop %v515
  %v517 = vmul.f32 1.0, %v516
  %v518 = vmul.f32 %v517, 2.0
  %v519 = vsub.f32 %v518, 1.0
  %v520 = vmul.f32 %v517, %v457
  %522 = vrot.lane.b32.xlu0 %v519, 64
  %v523 = vpop.permute.xlu0 %522
  %v525 = vmul.f32 %v517, %v523
  %527 = vrot.lane.b32.xlu0 %v525, 32
  %v528 = vpop.permute.xlu0 %527
  %v530 = vadd.f32 %v520, %v528
  %v531 = vtanh.pop %v530
  %533 = vrot.lane.b32.xlu0 %v531, 64
  %v534 = vpop.permute.xlu0 %533
  %v536 = vmul.f32 %v517, %v534
  %v537 = vpack.c.bf16 %v536, %v536
  %539 = vrot.lane.b32.xlu0 %v537, 32
  %v540 = vpop.permute.xlu0 %539
  %v542 = vsel %vm175, %v540, 0
  %544 = vmatprep.subr.bf16.mxu0 0
  %545 = vmatpush1.bf16.msra.mxu0 %v171
  %546 = vmatprep.subr.bf16.mxu0 0
  %547 = vmatpush1.bf16.msra.mxu0 %v172
  %548 = vmatprep.subr.bf16.mxu0 0
  %549 = vmatpush1.bf16.msra.mxu0 0
  %550 = vmatprep.subr.bf16.mxu0 0
  %551 = vmatpush1.bf16.msra.mxu0 0
  %552 = vmatprep.subr.bf16.mxu0 0
  %553 = vmatpush1.bf16.msra.mxu0 0
  %554 = vmatprep.subr.bf16.mxu0 0
  %555 = vmatpush1.bf16.msra.mxu0 0
  %556 = vmatprep.subr.bf16.mxu0 0
  %557 = vmatpush1.bf16.msra.mxu0 0
  %558 = vmatprep.subr.bf16.mxu0 0
  %559 = vmatpush1.bf16.msra.mxu0 0
  %560 = vmatprep.subr.bf16.mxu0 0
  %561 = vmatpush1.bf16.msra.mxu0 0
  %562 = vmatprep.subr.bf16.mxu0 0
  %563 = vmatpush1.bf16.msra.mxu0 0
  %564 = vmatprep.subr.bf16.mxu0 0
  %565 = vmatpush1.bf16.msra.mxu0 0
  %566 = vmatprep.subr.bf16.mxu0 0
  %567 = vmatpush1.bf16.msra.mxu0 0
  %568 = vmatprep.subr.bf16.mxu0 0
  %569 = vmatpush1.bf16.msra.mxu0 0
  %570 = vmatprep.subr.bf16.mxu0 0
  %571 = vmatpush1.bf16.msra.mxu0 0
  %572 = vmatprep.subr.bf16.mxu0 0
  %573 = vmatpush1.bf16.msra.mxu0 0
  %574 = vmatprep.subr.bf16.mxu0 0
  %575 = vmatpush1.bf16.msra.mxu0 0
  %576 = vmatprep.mubr.bf16.mxu0 0
  %577 = vmatmul.mubr.bf16.gmra.mrb[0].mxu0 %v542
  %v578 = vpop.f32.mrb[0].mxu0
  %v579 = vadd.f32 0.0, %v578
  %v580 = vpop.f32.mrb[0].mxu0
  %v581 = vpop.f32.mrb[0].mxu0
  %v582 = vpop.f32.mrb[0].mxu0
  %583 = vdwg.mxu0
  %v584 = vadd.f32 %v152, %v579
  %v585 = vxor.u32 %v584, 2147483648
  %v586 = vmul.f32 %v585, 1.442695
  %v587 = vpow.pop %v586
  %v588 = vadd.f32 %v587, 1.0
  %v589 = vrcp.pop %v588
  %v590 = vmul.f32 1.0, %v589
  %v591 = vmul.f32 %v590, 2.0
  %v592 = vsub.f32 %v591, 1.0
  %v593 = vmul.f32 %v590, %v530
  %595 = vrot.lane.b32.xlu0 %v592, 64
  %v596 = vpop.permute.xlu0 %595
  %v598 = vmul.f32 %v590, %v596
  %600 = vrot.lane.b32.xlu0 %v598, 32
  %v601 = vpop.permute.xlu0 %600
  %v603 = vadd.f32 %v593, %v601
  %v604 = vtanh.pop %v603
  %606 = vrot.lane.b32.xlu0 %v604, 64
  %v607 = vpop.permute.xlu0 %606
  %v609 = vmul.f32 %v590, %v607
  %v610 = vpack.c.bf16 %v609, %v609
  %612 = vrot.lane.b32.xlu0 %v610, 32
  %v613 = vpop.permute.xlu0 %612
  %v615 = vsel %vm175, %v613, 0
  %617 = vmatprep.subr.bf16.mxu0 0
  %618 = vmatpush1.bf16.msra.mxu0 %v171
  %619 = vmatprep.subr.bf16.mxu0 0
  %620 = vmatpush1.bf16.msra.mxu0 %v172
  %621 = vmatprep.subr.bf16.mxu0 0
  %622 = vmatpush1.bf16.msra.mxu0 0
  %623 = vmatprep.subr.bf16.mxu0 0
  %624 = vmatpush1.bf16.msra.mxu0 0
  %625 = vmatprep.subr.bf16.mxu0 0
  %626 = vmatpush1.bf16.msra.mxu0 0
  %627 = vmatprep.subr.bf16.mxu0 0
  %628 = vmatpush1.bf16.msra.mxu0 0
  %629 = vmatprep.subr.bf16.mxu0 0
  %630 = vmatpush1.bf16.msra.mxu0 0
  %631 = vmatprep.subr.bf16.mxu0 0
  %632 = vmatpush1.bf16.msra.mxu0 0
  %633 = vmatprep.subr.bf16.mxu0 0
  %634 = vmatpush1.bf16.msra.mxu0 0
  %635 = vmatprep.subr.bf16.mxu0 0
  %636 = vmatpush1.bf16.msra.mxu0 0
  %637 = vmatprep.subr.bf16.mxu0 0
  %638 = vmatpush1.bf16.msra.mxu0 0
  %639 = vmatprep.subr.bf16.mxu0 0
  %640 = vmatpush1.bf16.msra.mxu0 0
  %641 = vmatprep.subr.bf16.mxu0 0
  %642 = vmatpush1.bf16.msra.mxu0 0
  %643 = vmatprep.subr.bf16.mxu0 0
  %644 = vmatpush1.bf16.msra.mxu0 0
  %645 = vmatprep.subr.bf16.mxu0 0
  %646 = vmatpush1.bf16.msra.mxu0 0
  %647 = vmatprep.subr.bf16.mxu0 0
  %648 = vmatpush1.bf16.msra.mxu0 0
  %649 = vmatprep.mubr.bf16.mxu0 0
  %650 = vmatmul.mubr.bf16.gmra.mrb[0].mxu0 %v615
  %v651 = vpop.f32.mrb[0].mxu0
  %v652 = vadd.f32 0.0, %v651
  %v653 = vpop.f32.mrb[0].mxu0
  %v654 = vpop.f32.mrb[0].mxu0
  %v655 = vpop.f32.mrb[0].mxu0
  %656 = vdwg.mxu0
  %v657 = vadd.f32 %v157, %v652
  %v658 = vxor.u32 %v657, 2147483648
  %v659 = vmul.f32 %v658, 1.442695
  %v660 = vpow.pop %v659
  %v661 = vadd.f32 %v660, 1.0
  %v662 = vrcp.pop %v661
  %v663 = vmul.f32 1.0, %v662
  %v664 = vmul.f32 %v663, 2.0
  %v665 = vsub.f32 %v664, 1.0
  %v666 = vmul.f32 %v663, %v603
  %668 = vrot.lane.b32.xlu0 %v665, 64
  %v669 = vpop.permute.xlu0 %668
  %v671 = vmul.f32 %v663, %v669
  %673 = vrot.lane.b32.xlu0 %v671, 32
  %v674 = vpop.permute.xlu0 %673
  %v676 = vadd.f32 %v666, %v674
  %v677 = vtanh.pop %v676
  %679 = vrot.lane.b32.xlu0 %v677, 64
  %v680 = vpop.permute.xlu0 %679
  %v682 = vmul.f32 %v663, %v680
  %v683 = vpack.c.bf16 %v682, %v682
  %685 = vrot.lane.b32.xlu0 %v683, 32
  %v686 = vpop.permute.xlu0 %685
  %v688 = vsel %vm175, %v686, 0
  %690 = vmatprep.subr.bf16.mxu0 0
  %691 = vmatpush1.bf16.msra.mxu0 %v171
  %692 = vmatprep.subr.bf16.mxu0 0
  %693 = vmatpush1.bf16.msra.mxu0 %v172
  %694 = vmatprep.subr.bf16.mxu0 0
  %695 = vmatpush1.bf16.msra.mxu0 0
  %696 = vmatprep.subr.bf16.mxu0 0
  %697 = vmatpush1.bf16.msra.mxu0 0
  %698 = vmatprep.subr.bf16.mxu0 0
  %699 = vmatpush1.bf16.msra.mxu0 0
  %700 = vmatprep.subr.bf16.mxu0 0
  %701 = vmatpush1.bf16.msra.mxu0 0
  %702 = vmatprep.subr.bf16.mxu0 0
  %703 = vmatpush1.bf16.msra.mxu0 0
  %704 = vmatprep.subr.bf16.mxu0 0
  %705 = vmatpush1.bf16.msra.mxu0 0
  %706 = vmatprep.subr.bf16.mxu0 0
  %707 = vmatpush1.bf16.msra.mxu0 0
  %708 = vmatprep.subr.bf16.mxu0 0
  %709 = vmatpush1.bf16.msra.mxu0 0
  %710 = vmatprep.subr.bf16.mxu0 0
  %711 = vmatpush1.bf16.msra.mxu0 0
  %712 = vmatprep.subr.bf16.mxu0 0
  %713 = vmatpush1.bf16.msra.mxu0 0
  %714 = vmatprep.subr.bf16.mxu0 0
  %715 = vmatpush1.bf16.msra.mxu0 0
  %716 = vmatprep.subr.bf16.mxu0 0
  %717 = vmatpush1.bf16.msra.mxu0 0
  %718 = vmatprep.subr.bf16.mxu0 0
  %719 = vmatpush1.bf16.msra.mxu0 0
  %720 = vmatprep.subr.bf16.mxu0 0
  %721 = vmatpush1.bf16.msra.mxu0 0
  %722 = vmatprep.mubr.bf16.mxu0 0
  %723 = vmatmul.mubr.bf16.gmra.mrb[0].mxu0 %v688
  %v724 = vpop.f32.mrb[0].mxu0
  %v725 = vadd.f32 0.0, %v724
  %v726 = vpop.f32.mrb[0].mxu0
  %v727 = vpop.f32.mrb[0].mxu0
  %v728 = vpop.f32.mrb[0].mxu0
  %729 = vdwg.mxu0
  %v730 = vadd.f32 %v160, %v725
  %v731 = vxor.u32 %v730, 2147483648
  %v732 = vmul.f32 %v731, 1.442695
  %v733 = vpow.pop %v732
  %v734 = vadd.f32 %v733, 1.0
  %v735 = vrcp.pop %v734
  %v736 = vmul.f32 1.0, %v735
  %v737 = vmul.f32 %v736, 2.0
  %v738 = vsub.f32 %v737, 1.0
  %v739 = vmul.f32 %v736, %v676
  %741 = vrot.lane.b32.xlu0 %v738, 64
  %v742 = vpop.permute.xlu0 %741
  %v744 = vmul.f32 %v736, %v742
  %746 = vrot.lane.b32.xlu0 %v744, 32
  %v747 = vpop.permute.xlu0 %746
  %v749 = vadd.f32 %v739, %v747
  %v750 = vtanh.pop %v749
  %752 = vrot.lane.b32.xlu0 %v750, 64
  %v753 = vpop.permute.xlu0 %752
  %v755 = vmul.f32 %v736, %v753
  %v756 = vmax.f32 %v755, 0.0
  %v757 = vpack.c.bf16 %v756, %v756
  %v758 = vld [vmem:[%s4] sm:$0xf]
  %v759 = vld [vmem:[%s4 + $0x4] sm:$0xf]
  %v760 = vld [vmem:[%s4 + $0x8] sm:$0xf]
  %v761 = vld [vmem:[%s4 + $0xc] sm:$0xf]
  %v762 = vld [vmem:[%s5] sm:$0x1]
  %v764 = vlaneseq
  %v765 = vshrl.u32 %v764, 7
  %v766 = vsub.s32 0, %v765
  %v767 = vrot.slane %v762, %v766
  %770 = vrot.lane.b32.xlu0 %v757, 32
  %v771 = vpop.permute.xlu0 %770
  %v776 = vunpack.c.l.b16 %v758
  %v777 = vunpack.c.l.b16 %v759
  %v778 = vunpack.c.l.b16 %v760
  %v779 = vunpack.c.l.b16 %v761
  %v780 = vpack.c.b16 %v777, %v776
  %v781 = vpack.c.b16 %v779, %v778
  %v785 = vsel %vm175, %v771, 0
  %787 = vmatprep.subr.bf16.mxu0 0
  %788 = vmatpush1.bf16.msra.mxu0 %v780
  %789 = vmatprep.subr.bf16.mxu0 0
  %790 = vmatpush1.bf16.msra.mxu0 %v781
  %791 = vmatprep.subr.bf16.mxu0 0
  %792 = vmatpush1.bf16.msra.mxu0 0
  %793 = vmatprep.subr.bf16.mxu0 0
  %794 = vmatpush1.bf16.msra.mxu0 0
  %795 = vmatprep.subr.bf16.mxu0 0
  %796 = vmatpush1.bf16.msra.mxu0 0
  %797 = vmatprep.subr.bf16.mxu0 0
  %798 = vmatpush1.bf16.msra.mxu0 0
  %799 = vmatprep.subr.bf16.mxu0 0
  %800 = vmatpush1.bf16.msra.mxu0 0
  %801 = vmatprep.subr.bf16.mxu0 0
  %802 = vmatpush1.bf16.msra.mxu0 0
  %803 = vmatprep.subr.bf16.mxu0 0
  %804 = vmatpush1.bf16.msra.mxu0 0
  %805 = vmatprep.subr.bf16.mxu0 0
  %806 = vmatpush1.bf16.msra.mxu0 0
  %807 = vmatprep.subr.bf16.mxu0 0
  %808 = vmatpush1.bf16.msra.mxu0 0
  %809 = vmatprep.subr.bf16.mxu0 0
  %810 = vmatpush1.bf16.msra.mxu0 0
  %811 = vmatprep.subr.bf16.mxu0 0
  %812 = vmatpush1.bf16.msra.mxu0 0
  %813 = vmatprep.subr.bf16.mxu0 0
  %814 = vmatpush1.bf16.msra.mxu0 0
  %815 = vmatprep.subr.bf16.mxu0 0
  %816 = vmatpush1.bf16.msra.mxu0 0
  %817 = vmatprep.subr.bf16.mxu0 0
  %818 = vmatpush1.bf16.msra.mxu0 0
  %819 = vmatprep.mubr.bf16.mxu0 0
  %820 = vmatmul.mubr.bf16.gmra.mrb[0].mxu0 %v785
  %v821 = vpop.f32.mrb[0].mxu0
  %v822 = vadd.f32 %v767, %v821
  %v823 = vpop.f32.mrb[0].mxu0
  %v824 = vpop.f32.mrb[0].mxu0
  %v825 = vpop.f32.mrb[0].mxu0
  %826 = vdwg.mxu0
  %v827 = vmax.f32 %v822, 0.0
  %v828 = vpack.c.bf16 %v827, %v827
  %v829 = vld [vmem:[%s6] sm:$0xf]
  %v830 = vld [vmem:[%s6 + $0x4] sm:$0x1]
  %v831 = vld [vmem:[%s7] sm:$0x1]
  %v833 = vlaneseq
  %v834 = vshrl.u32 %v833, 7
  %v835 = vsub.s32 0, %v834
  %v836 = vrot.slane %v831, %v835
  %v840 = vunpack.c.l.b16 %v829
  %v841 = vunpack.c.l.b16 %v830
  %v842 = vpack.c.b16 %v841, %v840
  %vm843 = vcmask 80896
  %v845 = vsel %vm843, %v828, 0
  %vm847 = vcmask 1044480
  %v849 = vsel %vm847, %v842, 0
  %851 = vmatprep.subr.bf16.mxu0 0
  %852 = vmatpush1.bf16.msra.mxu0 %v849
  %853 = vmatprep.subr.bf16.mxu0 0
  %854 = vmatpush1.bf16.msra.mxu0 0
  %855 = vmatprep.subr.bf16.mxu0 0
  %856 = vmatpush1.bf16.msra.mxu0 0
  %857 = vmatprep.subr.bf16.mxu0 0
  %858 = vmatpush1.bf16.msra.mxu0 0
  %859 = vmatprep.subr.bf16.mxu0 0
  %860 = vmatpush1.bf16.msra.mxu0 0
  %861 = vmatprep.subr.bf16.mxu0 0
  %862 = vmatpush1.bf16.msra.mxu0 0
  %863 = vmatprep.subr.bf16.mxu0 0
  %864 = vmatpush1.bf16.msra.mxu0 0
  %865 = vmatprep.subr.bf16.mxu0 0
  %866 = vmatpush1.bf16.msra.mxu0 0
  %867 = vmatprep.subr.bf16.mxu0 0
  %868 = vmatpush1.bf16.msra.mxu0 0
  %869 = vmatprep.subr.bf16.mxu0 0
  %870 = vmatpush1.bf16.msra.mxu0 0
  %871 = vmatprep.subr.bf16.mxu0 0
  %872 = vmatpush1.bf16.msra.mxu0 0
  %873 = vmatprep.subr.bf16.mxu0 0
  %874 = vmatpush1.bf16.msra.mxu0 0
  %875 = vmatprep.subr.bf16.mxu0 0
  %876 = vmatpush1.bf16.msra.mxu0 0
  %877 = vmatprep.subr.bf16.mxu0 0
  %878 = vmatpush1.bf16.msra.mxu0 0
  %879 = vmatprep.subr.bf16.mxu0 0
  %880 = vmatpush1.bf16.msra.mxu0 0
  %881 = vmatprep.subr.bf16.mxu0 0
  %882 = vmatpush1.bf16.msra.mxu0 0
  %883 = vmatprep.mubr.bf16.mxu0 0
  %884 = vmatmul.mubr.bf16.gmra.mrb[0].mxu0 %v845
  %v885 = vpop.f32.mrb[0].mxu0
  %v886 = vadd.f32 %v836, %v885
  %v887 = vpop.f32.mrb[0].mxu0
  %v888 = vpop.f32.mrb[0].mxu0
  %v889 = vpop.f32.mrb[0].mxu0
  %890 = vdwg.mxu0
  %v891 = vxor.u32 %v886, 2147483648
  %v892 = vmul.f32 %v891, 1.442695
  %v893 = vpow.pop %v892
  %v894 = vadd.f32 %v893, 1.0
  %v895 = vrcp.pop %v894
  %v896 = vmul.f32 1.0, %v895
  %vm897 = vcmask 23552
  %898 = vst.msk [vmem:[%s8] sm:$0xff] %vm897, %v896
  // Predicated region
  $region34: #{net_forward.1} parent=0 // pred_check
    _
  $region35: #{net_forward.1} parent=0 // pred_check_branch
    %900 = sbr.rel (0) target = $region37
  $region36: #{net_forward.1} parent=0 // pred_region
    _
  $region37: #{net_forward.1} parent=0 // pred_fallthru
    _
  // Predicated region
  $region38: #{net_forward.1} parent=0 // pred_check
    _
  $region39: #{net_forward.1} parent=0 // pred_check_branch
    %902 = sbr.rel (0) target = $region41
  $region40: #{net_forward.1} parent=0 // pred_region
    _
  $region41: #{net_forward.1} parent=0 // pred_fallthru
    _

</llo_original>
